<compile_context>
chip_gen: v7x
topology: tpu7x:2x2x1
jax: 0.10.0
libtpu: 0.0.40
codegen_flags: <defaults>
</compile_context>

<pallas_src>
import functools

import jax
import jax.numpy as jnp
from jax.experimental import pallas as pl
from jax.experimental.pallas import tpu as pltpu


_BN_EPS = 1e-5


def _round_up(x, m):
    return ((x + m - 1) // m) * m


@functools.lru_cache(maxsize=None)
def _vmem_budgets():
    """Return (vmem_limit_bytes, per-step tile working-set budget)."""
    cap = None
    try:
        get_info = getattr(pltpu, "get_tpu_info", None)
        if get_info is not None:
            cap = getattr(get_info(), "vmem_capacity_bytes", None)
    except Exception:
        cap = None
    if cap is not None and cap >= 100 * 1024 * 1024:
        # 128 MiB parts (v5e / v6e): larger row tiles amortize the ~0.35 us
        # per-grid-step overhead and deepen DMA overlap.
        return 64 * 1024 * 1024, 24 * 1024 * 1024
    # v7x-safe defaults (64 MiB physical VMEM per TensorCore) / unknown parts.
    return 32 * 1024 * 1024, 10 * 1024 * 1024


# ---------------------------------------------------------------------------
# Plain-JAX glue: sampling & grouping (mirrors the PyTorch helper functions)
# ---------------------------------------------------------------------------
def square_distance(src, dst):
    # src: [B, N, C], dst: [B, M, C] -> [B, N, M]
    dist = -2.0 * jnp.matmul(src, jnp.swapaxes(dst, 1, 2))
    dist = dist + jnp.sum(src ** 2, axis=-1)[:, :, None]
    dist = dist + jnp.sum(dst ** 2, axis=-1)[:, None, :]
    return dist


def index_points(points, idx):
    # points: [B, N, C], idx: [B, ...] -> [B, ..., C]
    B = points.shape[0]
    batch = jnp.arange(B).reshape((B,) + (1,) * (idx.ndim - 1))
    return points[batch, idx]


def farthest_point_sample(xyz, npoint, key):
    # xyz: [B, N, 3] -> [B, npoint] indices (lax.scan, deterministic seed).
    B, N, _ = xyz.shape
    batch_idx = jnp.arange(B)
    distance0 = jnp.full((B, N), 1e10, dtype=xyz.dtype)
    farthest0 = jax.random.randint(key, (B,), 0, N, dtype=jnp.int32)

    def step(carry, _):
        distance, farthest = carry
        centroid = xyz[batch_idx, farthest, :][:, None, :]          # [B, 1, 3]
        dist = jnp.sum((xyz - centroid) ** 2, axis=-1)               # [B, N]
        distance = jnp.minimum(distance, dist)
        new_farthest = jnp.argmax(distance, axis=-1).astype(jnp.int32)
        return (distance, new_farthest), farthest

    (_, _), centroids = jax.lax.scan(step, (distance0, farthest0), None,
                                     length=npoint)
    return jnp.transpose(centroids)                                  # [B, npoint]


def query_ball_point(radius, nsample, xyz, new_xyz):
    # xyz: [B, N, 3], new_xyz: [B, S, 3] -> [B, S, nsample] indices
    B, N, _ = xyz.shape
    S = new_xyz.shape[1]
    sqrdists = square_distance(new_xyz, xyz)                         # [B, S, N]
    group_idx = jnp.broadcast_to(jnp.arange(N, dtype=jnp.int32), (B, S, N))
    group_idx = jnp.where(sqrdists > radius ** 2, N, group_idx)
    group_idx = jnp.sort(group_idx, axis=-1)[:, :, :nsample]
    group_first = group_idx[:, :, 0:1]
    group_idx = jnp.where(group_idx == N, group_first, group_idx)
    return group_idx


def sample_and_group(npoint, radius, nsample, xyz, points, key):
    # xyz: [B, N, 3], points: [B, N, D]
    fps_idx = farthest_point_sample(xyz, npoint, key)                # [B, S]
    new_xyz = index_points(xyz, fps_idx)                             # [B, S, 3]
    idx = query_ball_point(radius, nsample, xyz, new_xyz)            # [B, S, K]
    grouped_xyz = index_points(xyz, idx)                             # [B, S, K, 3]
    grouped_xyz_norm = grouped_xyz - new_xyz[:, :, None, :]
    if points is not None:
        grouped_points = index_points(points, idx)                   # [B, S, K, D]
        new_points = jnp.concatenate([grouped_xyz_norm, grouped_points], axis=-1)
    else:
        new_points = grouped_xyz_norm
    return new_xyz, new_points


def sample_and_group_all(xyz, points):
    B, N, C = xyz.shape
    new_xyz = jnp.zeros((B, 1, C), dtype=xyz.dtype)
    grouped_xyz = xyz[:, None, :, :]
    if points is not None:
        new_points = jnp.concatenate([grouped_xyz, points[:, None, :, :]], axis=-1)
    else:
        new_points = grouped_xyz
    return new_xyz, new_points


# ---------------------------------------------------------------------------
# Pallas kernels
# ---------------------------------------------------------------------------
def _mlp_layer_kernel(*refs, has_prelude, emit_minmax, tile_bs, nsample):
    """One shared-MLP layer on a row tile:
       (optional fused affine+ReLU prelude of the previous layer's BN) ->
       1x1-conv matmul on the MXU (bf16 in, f32 accumulate) ->
       either a bf16 activation store (middle layers) or per-group max/min
       over the K axis (last layer, fused max), plus f32 BN partial sums."""
    if has_prelude:
        x_ref, scale_ref, shift_ref, w_ref = refs[:4]
        out_refs = refs[4:]
        h = x_ref[...].astype(jnp.float32) * scale_ref[...] + shift_ref[...]
        h = jnp.maximum(h, 0.0).astype(jnp.bfloat16)
    else:
        x_ref, w_ref = refs[:2]
        out_refs = refs[2:]
        h = x_ref[...]                                   # bf16, zero-padded rows

    y = jnp.dot(h, w_ref[...], preferred_element_type=jnp.float32)

    if emit_minmax:
        ymax_ref, ymin_ref, stats_ref = out_refs
        c_out = y.shape[-1]
        yg = y.reshape(tile_bs, nsample, c_out)          # K % 8 == 0: clean view
        ymax_ref[...] = jnp.max(yg, axis=1)
        ymin_ref[...] = jnp.min(yg, axis=1)
    else:
        y_ref, stats_ref = out_refs
        y_ref[...] = y.astype(y_ref.dtype)

    s1 = jnp.sum(y, axis=0, keepdims=True)               # (1, Cp) f32
    s2 = jnp.sum(y * y, axis=0, keepdims=True)
    stats_ref[...] = jnp.concatenate([s1, s2], axis=0).reshape(1, 2, -1)


def _affine_relu_max_kernel(y_ref, scale_ref, shift_ref, o_ref):
    """Fallback (K % 8 != 0): last BN-affine + ReLU, then max over K."""
    h = y_ref[...].astype(jnp.float32) * scale_ref[...] + shift_ref[...]
    h = jnp.maximum(h, 0.0)
    o_ref[...] = jnp.max(h, axis=1)


def _run_mlp_layer(x, w_t, scale, shift, *, tile_bs, nsample, num_tiles,
                   emit_minmax, vmem_limit):
    r_pad, c_in = x.shape
    c_out = w_t.shape[1]
    tile_r = tile_bs * nsample
    has_prelude = scale is not None

    in_specs = [pl.BlockSpec((tile_r, c_in), lambda i: (i, 0))]
    operands = [x]
    if has_prelude:
        in_specs += [pl.BlockSpec((1, c_in), lambda i: (0, 0)),
                     pl.BlockSpec((1, c_in), lambda i: (0, 0))]
        operands += [scale, shift]
    in_specs.append(pl.BlockSpec((c_in, c_out), lambda i: (0, 0)))
    operands.append(w_t)

    if emit_minmax:
        bs_pad = r_pad // nsample
        out_shape = (jax.ShapeDtypeStruct((bs_pad, c_out), jnp.float32),
                     jax.ShapeDtypeStruct((bs_pad, c_out), jnp.float32),
                     jax.ShapeDtypeStruct((num_tiles, 2, c_out), jnp.float32))
        out_specs = (pl.BlockSpec((tile_bs, c_out), lambda i: (i, 0)),
                     pl.BlockSpec((tile_bs, c_out), lambda i: (i, 0)),
                     pl.BlockSpec((1, 2, c_out), lambda i: (i, 0, 0)))
        out_bytes = 2 * bs_pad * c_out * 4
    else:
        out_shape = (jax.ShapeDtypeStruct((r_pad, c_out), jnp.bfloat16),
                     jax.ShapeDtypeStruct((num_tiles, 2, c_out), jnp.float32))
        out_specs = (pl.BlockSpec((tile_r, c_out), lambda i: (i, 0)),
                     pl.BlockSpec((1, 2, c_out), lambda i: (i, 0, 0)))
        out_bytes = r_pad * c_out * 2

    flops = 2 * r_pad * c_in * c_out
    bytes_accessed = (r_pad * c_in * 2 + c_in * c_out * 2 + out_bytes
                      + num_tiles * 2 * c_out * 4
                      + (2 * c_in * 4 if has_prelude else 0))

    kernel = functools.partial(_mlp_layer_kernel, has_prelude=has_prelude,
                               emit_minmax=emit_minmax,
                               tile_bs=tile_bs, nsample=nsample)
    return pl.pallas_call(
        kernel,
        grid=(num_tiles,),
        in_specs=in_specs,
        out_specs=out_specs,
        out_shape=out_shape,
        compiler_params=pltpu.CompilerParams(
            dimension_semantics=("parallel",),
            vmem_limit_bytes=vmem_limit),
        cost_estimate=pl.CostEstimate(flops=flops, transcendentals=0,
                                      bytes_accessed=bytes_accessed),
    )(*operands)


def _run_affine_relu_max(y3, scale, shift, *, tile_bs, num_tiles, vmem_limit):
    # Fallback path only (K % 8 != 0); reuses the matmul tile for simplicity.
    bs_pad, nsample, c = y3.shape
    return pl.pallas_call(
        _affine_relu_max_kernel,
        grid=(num_tiles,),
        in_specs=[pl.BlockSpec((tile_bs, nsample, c), lambda i: (i, 0, 0)),
                  pl.BlockSpec((1, 1, c), lambda i: (0, 0, 0)),
                  pl.BlockSpec((1, 1, c), lambda i: (0, 0, 0))],
        out_specs=pl.BlockSpec((tile_bs, c), lambda i: (i, 0)),
        out_shape=jax.ShapeDtypeStruct((bs_pad, c), jnp.float32),
        compiler_params=pltpu.CompilerParams(
            dimension_semantics=("parallel",),
            vmem_limit_bytes=vmem_limit),
        cost_estimate=pl.CostEstimate(
            flops=3 * bs_pad * nsample * c, transcendentals=0,
            bytes_accessed=bs_pad * nsample * c * 2 + bs_pad * c * 4 + 2 * c * 4),
    )(y3, scale.reshape(1, 1, c), shift.reshape(1, 1, c))


def _bn_fold(stats, gamma_p, beta_p, n_rows, pad_row_value=None, n_pad_rows=0,
             eps=_BN_EPS):
    """Reduce per-tile (sum, sum_sq) partials into a per-channel affine that is
    equivalent to training-mode BatchNorm2d (biased variance over B*K*S rows).
    Padded rows are NOT masked in the kernel; their known constant per-row
    value `pad_row_value` is subtracted here instead."""
    sums = jnp.sum(stats, axis=0)                                 # (2, Cp) f32
    s1, s2 = sums[0], sums[1]
    if pad_row_value is not None and n_pad_rows > 0:
        v = pad_row_value.reshape(-1)
        s1 = s1 - n_pad_rows * v
        s2 = s2 - n_pad_rows * (v * v)
    mean = s1 / n_rows
    var = jnp.maximum(s2 / n_rows - mean * mean, 0.0)
    scale = gamma_p * jax.lax.rsqrt(var + eps)
    shift = beta_p - mean * scale
    return scale.reshape(1, -1), shift.reshape(1, -1)


def _choose_tile_bs(nsample, c_max, bs, tile_budget):
    # Per-row working set: double-buffered bf16 input/output blocks PLUS the
    # f32 in-kernel temporaries (prelude h, matmul accumulator, y*y) — about
    # 32 bytes per row per (max) channel.  The double-buffered bf16 weight
    # block is a fixed cost subtracted from the budget.
    per_row = 32 * c_max
    weight_bytes = 2 * 2 * c_max * c_max
    budget = max(tile_budget - weight_bytes, 2 * 1024 * 1024)
    tile_r = max(8 * nsample, budget // per_row)
    tile_bs = max(8, (tile_r // nsample) // 8 * 8)                # multiple of 8
    tile_bs = min(tile_bs, 1024)
    tile_bs = min(tile_bs, _round_up(bs, 8))
    # Guarantee >= 2 steps on the "parallel" grid axis whenever bs permits so
    # both v7x TensorCores get work (free on single-TC v5e/v6e).
    if tile_bs > 8 and _round_up(bs, tile_bs) // tile_bs < 2:
        tile_bs = max(8, (tile_bs // 2) // 8 * 8)
    return tile_bs


@jax.jit
def sa_mlp_max_pallas(new_points, params):
    """Shared MLP (1x1 conv + training-mode BN + ReLU) stack, then max over K.

    new_points: [B, S, K, C_in] channels-last neighbor groups.
    params:     list of (conv_weight [C_out, C_in_l], bn_gamma, bn_beta).
    Returns:    [B, S, C_out_last] float32.
    """
    B, S, K, c_in0 = new_points.shape
    bs = B * S
    n_layers = len(params)
    c_out_real = [w.shape[0] for (w, _, _) in params]
    # Layer-0 channel padding: lane-dense (128) when the input is already wide
    # (e.g. 131/259 in deeper SA layers), minimal 8-pad when it is tiny (~6-9).
    cin_p = _round_up(c_in0, 128) if c_in0 >= 64 else _round_up(max(c_in0, 8), 8)
    cps = [_round_up(c, 128) for c in c_out_real]                 # lane-dense

    vmem_limit, tile_budget = _vmem_budgets()
    tile_bs = _choose_tile_bs(K, max([cin_p] + cps), bs, tile_budget)
    bs_pad = _round_up(bs, tile_bs)
    num_tiles = bs_pad // tile_bs
    r_pad = bs_pad * K
    r_real = bs * K
    n_pad_rows = r_pad - r_real
    fuse_last = (K % 8 == 0)   # in-kernel (tile_r,Cp)->(tile_bs,K,Cp) view OK

    # Pad rows (BS) and channels once in the wrapper; flatten to [R, C] bf16.
    x = new_points.reshape(bs, K, c_in0).astype(jnp.float32)
    x = jnp.pad(x, ((0, bs_pad - bs), (0, 0), (0, cin_p - c_in0)))
    x = x.reshape(r_pad, cin_p).astype(jnp.bfloat16)

    # Pad weights / BN params to the lane-dense channel widths (pad gamma/beta
    # with zeros so padded channels stay exactly zero through every layer).
    w_ts, gammas, betas = [], [], []
    c_prev = cin_p
    for li, (w, g, b) in enumerate(params):
        oc, ic = w.shape
        cp = cps[li]
        w_t = jnp.zeros((c_prev, cp), jnp.float32).at[:ic, :oc].set(jnp.transpose(w))
        w_ts.append(w_t.astype(jnp.bfloat16))
        gammas.append(jnp.pad(g.astype(jnp.float32), (0, cp - oc)))
        betas.append(jnp.pad(b.astype(jnp.float32), (0, cp - oc)))
        c_prev = cp

    # Conv bias is dropped on purpose: under training-mode BatchNorm it cancels
    # exactly against the batch-mean subtraction.
    # NOTE: BN stats come from the f32 conv output inside the kernel while the
    # next layer normalizes the bf16-rounded activation — a negligible
    # train-mode rounding mismatch vs PyTorch.
    y = x
    scale = shift = None
    v_bf = None               # bf16-rounded padded-row conv output (prev layer)
    ymax = ymin = None
    for li in range(n_layers):
        emit_minmax = fuse_last and (li == n_layers - 1)
        res = _run_mlp_layer(y, w_ts[li], scale, shift,
                             tile_bs=tile_bs, nsample=K, num_tiles=num_tiles,
                             emit_minmax=emit_minmax, vmem_limit=vmem_limit)
        if emit_minmax:
            ymax, ymin, stats = res
        else:
            y, stats = res

        if n_pad_rows > 0:
            # Known constant conv-output value of a padded row at this layer
            # (chained layer by layer); used to correct the BN partial sums.
            if li == 0:
                v = jnp.zeros((1, cps[0]), jnp.float32)   # zero-padded input
            else:
                h_pad = jnp.maximum(v_bf.astype(jnp.float32) * scale + shift, 0.0)
                v = jnp.dot(h_pad.astype(jnp.bfloat16), w_ts[li],
                            preferred_element_type=jnp.float32)
            scale, shift = _bn_fold(stats, gammas[li], betas[li], r_real,
                                    pad_row_value=v, n_pad_rows=n_pad_rows)
            v_bf = v.astype(jnp.bfloat16)
        else:
            scale, shift = _bn_fold(stats, gammas[li], betas[li], r_real)

    if fuse_last:
        # Sign-aware final affine + ReLU applied to the per-group max/min of
        # the raw conv output (exact since affine+ReLU are monotone per sign).
        sel = jnp.where(scale >= 0.0, ymax, ymin)         # [bs_pad, Cp_last]
        out = jnp.maximum(sel * scale + shift, 0.0)
    else:
        # Fallback: full activation + separate affine/ReLU/max pass.
        y3 = y.reshape(bs_pad, K, cps[-1])
        out = _run_affine_relu_max(y3, scale, shift, tile_bs=tile_bs,
                                   num_tiles=num_tiles, vmem_limit=vmem_limit)

    return out[:bs, :c_out_real[-1]].reshape(B, S, c_out_real[-1])


# ---------------------------------------------------------------------------
# Module equivalent
# ---------------------------------------------------------------------------
class PointNetSetAbstractionPallas:
    def __init__(self, npoint, radius, nsample, in_channel, mlp, group_all, key):
        self.npoint = npoint
        self.radius = radius
        self.nsample = nsample
        self.group_all = group_all
        # Conv2d-style uniform init; BN gamma=1, beta=0.  The Conv2d bias is
        # intentionally omitted: under training-mode BatchNorm it cancels
        # exactly against the batch-mean subtraction (numerically identical).
        self.params = []
        last = in_channel
        for oc in mlp:
            key, k_w = jax.random.split(key)
            bound = 1.0 / (last ** 0.5)
            w = jax.random.uniform(k_w, (oc, last), minval=-bound, maxval=bound,
                                   dtype=jnp.float32)
            self.params.append((w,
                                jnp.ones((oc,), jnp.float32),
                                jnp.zeros((oc,), jnp.float32)))
            last = oc

    def __call__(self, xyz, points, key):
        """
        xyz:    [B, 3, N]
        points: [B, D, N] or None
        returns new_xyz [B, 3, S], new_points [B, C_out, S]
        """
        xyz_t = jnp.transpose(xyz, (0, 2, 1))                       # [B, N, 3]
        points_t = (jnp.transpose(points, (0, 2, 1))
                    if points is not None else None)                # [B, N, D]

        if self.group_all:
            new_xyz, new_points = sample_and_group_all(xyz_t, points_t)
        else:
            new_xyz, new_points = sample_and_group(
                self.npoint, self.radius, self.nsample, xyz_t, points_t, key)
        # new_points: [B, S, K, C_in]

        feats = sa_mlp_max_pallas(new_points, self.params)          # [B, S, C_out]

        new_points_out = jnp.transpose(feats, (0, 2, 1))            # [B, C_out, S]
        new_xyz_out = jnp.transpose(new_xyz, (0, 2, 1))             # [B, 3, S]
        return new_xyz_out, new_points_out


# ---------------------------------------------------------------------------
if __name__ == "__main__":
    key = jax.random.PRNGKey(0)
    k_xyz, k_pts, k_param, k_fps = jax.random.split(key, 4)

    B, N, D = 2, 16, 3
    npoint, radius, nsample = 4, 0.8, 8
    mlp = [16, 32]

    xyz = jax.random.normal(k_xyz, (B, 3, N), dtype=jnp.float32)
    points = jax.random.normal(k_pts, (B, D, N), dtype=jnp.float32)

    sa = PointNetSetAbstractionPallas(
        npoint=npoint, radius=radius, nsample=nsample,
        in_channel=3 + D, mlp=mlp, group_all=False, key=k_param)

    new_xyz, new_points = sa(xyz, points, k_fps)
    jax.block_until_ready((new_xyz, new_points))

    assert new_xyz.shape == (B, 3, npoint), new_xyz.shape
    assert new_points.shape == (B, mlp[-1], npoint), new_points.shape
    assert bool(jnp.all(jnp.isfinite(new_points)))

    print("KERNEL_OK")
</pallas_src>

<mosaic_0001>
module attributes {stable_mosaic.version = 11 : i64} {
  func.func @_mlp_layer_kernel(%arg0: i32, %arg1: memref<64x8xbf16, #tpu.memory_space<vmem>>, %arg2: memref<8x128xbf16, #tpu.memory_space<vmem>>, %arg3: memref<64x128xbf16, #tpu.memory_space<vmem>>, %arg4: memref<1x2x128xf32, #tpu.memory_space<vmem>>) attributes {dimension_semantics = [#tpu.dimension_semantics<parallel>], iteration_bounds = array<i64: 1>, scalar_prefetch = 0 : i64, scratch_operands = 0 : i64, tpu.core_type = #tpu.core_type<tc>, window_params = [{transform_indices = @transform_0, window_bounds = array<i64: 64, 8>}, {pipeline_mode = #tpu.pipeline_mode<synchronous>, transform_indices = @transform_1, window_bounds = array<i64: 8, 128>}, {transform_indices = @transform_2, window_bounds = array<i64: 64, 128>}, {transform_indices = @transform_3, window_bounds = array<i64: 1, 2, 128>}]} {
    %c0 = arith.constant 0 : index
    %c0_0 = arith.constant 0 : index
    %0 = vector.load %arg1[%c0, %c0_0] : memref<64x8xbf16, #tpu.memory_space<vmem>>, vector<64x8xbf16>
    %c0_1 = arith.constant 0 : index
    %c0_2 = arith.constant 0 : index
    %1 = vector.load %arg2[%c0_1, %c0_2] : memref<8x128xbf16, #tpu.memory_space<vmem>>, vector<8x128xbf16>
    %cst = arith.constant dense<0.000000e+00> : vector<64x128xf32>
    %2 = tpu.matmul %0, %1, %cst {dimension_numbers = #tpu.dot_dimension_numbers<[1], [0], [0], [1], [0, 0, 1, 1], [], []>} : vector<64x8xbf16>, vector<8x128xbf16>, vector<64x128xf32> -> vector<64x128xf32>
    %3 = arith.truncf %2 : vector<64x128xf32> to vector<64x128xbf16>
    %c0_3 = arith.constant 0 : index
    %c0_4 = arith.constant 0 : index
    %4 = vector.load %arg3[%c0_3, %c0_4] : memref<64x128xbf16, #tpu.memory_space<vmem>>, vector<64x128xbf16>
    tpu.vector_store %arg3[%c0_3, %c0_4], %3 {strides = array<i32>} : memref<64x128xbf16, #tpu.memory_space<vmem>>, vector<64x128xbf16>,
    %cst_5 = arith.constant dense<0.000000e+00> : vector<128xf32>
    %5 = vector.multi_reduction <add>, %2, %cst_5 [0] : vector<64x128xf32> to vector<128xf32>
    %6 = vector.shape_cast %5 : vector<128xf32> to vector<1x128xf32>
    %7 = arith.mulf %2, %2 : vector<64x128xf32>
    %cst_6 = arith.constant dense<0.000000e+00> : vector<128xf32>
    %8 = vector.multi_reduction <add>, %7, %cst_6 [0] : vector<64x128xf32> to vector<128xf32>
    %9 = vector.shape_cast %8 : vector<128xf32> to vector<1x128xf32>
    %10 = tpu.concatenate %6, %9 in 0 : vector<1x128xf32>, vector<1x128xf32> -> vector<2x128xf32>
    %11 = vector.shape_cast %10 : vector<2x128xf32> to vector<1x2x128xf32>
    %c0_7 = arith.constant 0 : index
    %c0_8 = arith.constant 0 : index
    %c0_9 = arith.constant 0 : index
    %12 = vector.load %arg4[%c0_7, %c0_8, %c0_9] : memref<1x2x128xf32, #tpu.memory_space<vmem>>, vector<1x2x128xf32>
    tpu.vector_store %arg4[%c0_7, %c0_8, %c0_9], %11 {strides = array<i32>} : memref<1x2x128xf32, #tpu.memory_space<vmem>>, vector<1x2x128xf32>,
    return
  }
  func.func @transform_0(%arg0: i32) -> (i32, i32) {
    %c0_i32 = arith.constant 0 : i32
    %c0_i32_0 = arith.constant 0 : i32
    return %arg0, %c0_i32 : i32, i32
  }
  func.func @transform_1(%arg0: i32) -> (i32, i32) {
    %c0_i32 = arith.constant 0 : i32
    %c0_i32_0 = arith.constant 0 : i32
    %c0_i32_1 = arith.constant 0 : i32
    return %c0_i32, %c0_i32_0 : i32, i32
  }
  func.func @transform_2(%arg0: i32) -> (i32, i32) {
    %c0_i32 = arith.constant 0 : i32
    %c0_i32_0 = arith.constant 0 : i32
    return %arg0, %c0_i32 : i32, i32
  }
  func.func @transform_3(%arg0: i32) -> (i32, i32, i32) {
    %c0_i32 = arith.constant 0 : i32
    %c0_i32_0 = arith.constant 0 : i32
    %c0_i32_1 = arith.constant 0 : i32
    return %arg0, %c0_i32, %c0_i32_0 : i32, i32, i32
  }
}

module attributes {stable_mosaic.version = 11 : i64} {
  func.func @_mlp_layer_kernel(%arg0: i32, %arg1: memref<64x128xbf16, #tpu.memory_space<vmem>>, %arg2: memref<1x128xf32, #tpu.memory_space<vmem>>, %arg3: memref<1x128xf32, #tpu.memory_space<vmem>>, %arg4: memref<128x128xbf16, #tpu.memory_space<vmem>>, %arg5: memref<8x128xf32, #tpu.memory_space<vmem>>, %arg6: memref<8x128xf32, #tpu.memory_space<vmem>>, %arg7: memref<1x2x128xf32, #tpu.memory_space<vmem>>) attributes {dimension_semantics = [#tpu.dimension_semantics<parallel>], iteration_bounds = array<i64: 1>, scalar_prefetch = 0 : i64, scratch_operands = 0 : i64, tpu.core_type = #tpu.core_type<tc>, window_params = [{transform_indices = @transform_0, window_bounds = array<i64: 64, 128>}, {pipeline_mode = #tpu.pipeline_mode<synchronous>, transform_indices = @transform_1, window_bounds = array<i64: 1, 128>}, {pipeline_mode = #tpu.pipeline_mode<synchronous>, transform_indices = @transform_2, window_bounds = array<i64: 1, 128>}, {pipeline_mode = #tpu.pipeline_mode<synchronous>, transform_indices = @transform_3, window_bounds = array<i64: 128, 128>}, {transform_indices = @transform_4, window_bounds = array<i64: 8, 128>}, {transform_indices = @transform_5, window_bounds = array<i64: 8, 128>}, {transform_indices = @transform_6, window_bounds = array<i64: 1, 2, 128>}]} {
    %c0 = arith.constant 0 : index
    %c0_0 = arith.constant 0 : index
    %0 = vector.load %arg1[%c0, %c0_0] : memref<64x128xbf16, #tpu.memory_space<vmem>>, vector<64x128xbf16>
    %1 = arith.extf %0 : vector<64x128xbf16> to vector<64x128xf32>
    %c0_1 = arith.constant 0 : index
    %c0_2 = arith.constant 0 : index
    %2 = vector.load %arg2[%c0_1, %c0_2] : memref<1x128xf32, #tpu.memory_space<vmem>>, vector<1x128xf32>
    %3 = vector.broadcast %2 : vector<1x128xf32> to vector<64x128xf32>
    %4 = arith.mulf %1, %3 : vector<64x128xf32>
    %c0_3 = arith.constant 0 : index
    %c0_4 = arith.constant 0 : index
    %5 = vector.load %arg3[%c0_3, %c0_4] : memref<1x128xf32, #tpu.memory_space<vmem>>, vector<1x128xf32>
    %6 = vector.broadcast %5 : vector<1x128xf32> to vector<64x128xf32>
    %7 = arith.addf %4, %6 : vector<64x128xf32>
    %cst = arith.constant 0.000000e+00 : f32
    %8 = vector.broadcast %cst : f32 to vector<64x128xf32>
    %9 = arith.maximumf %7, %8 : vector<64x128xf32>
    %10 = arith.truncf %9 : vector<64x128xf32> to vector<64x128xbf16>
    %c0_5 = arith.constant 0 : index
    %c0_6 = arith.constant 0 : index
    %11 = vector.load %arg4[%c0_5, %c0_6] : memref<128x128xbf16, #tpu.memory_space<vmem>>, vector<128x128xbf16>
    %cst_7 = arith.constant dense<0.000000e+00> : vector<64x128xf32>
    %12 = tpu.matmul %10, %11, %cst_7 {dimension_numbers = #tpu.dot_dimension_numbers<[1], [0], [0], [1], [0, 0, 1, 1], [], []>} : vector<64x128xbf16>, vector<128x128xbf16>, vector<64x128xf32> -> vector<64x128xf32>
    %13 = vector.shape_cast %12 : vector<64x128xf32> to vector<8x8x128xf32>
    %cst_8 = arith.constant dense<0xFF800000> : vector<8x128xf32>
    %14 = vector.multi_reduction <maximumf>, %13, %cst_8 [1] : vector<8x8x128xf32> to vector<8x128xf32>
    %c0_9 = arith.constant 0 : index
    %c0_10 = arith.constant 0 : index
    %15 = vector.load %arg5[%c0_9, %c0_10] : memref<8x128xf32, #tpu.memory_space<vmem>>, vector<8x128xf32>
    tpu.vector_store %arg5[%c0_9, %c0_10], %14 {strides = array<i32>} : memref<8x128xf32, #tpu.memory_space<vmem>>, vector<8x128xf32>,
    %cst_11 = arith.constant dense<0x7F800000> : vector<8x128xf32>
    %16 = vector.multi_reduction <minimumf>, %13, %cst_11 [1] : vector<8x8x128xf32> to vector<8x128xf32>
    %c0_12 = arith.constant 0 : index
    %c0_13 = arith.constant 0 : index
    %17 = vector.load %arg6[%c0_12, %c0_13] : memref<8x128xf32, #tpu.memory_space<vmem>>, vector<8x128xf32>
    tpu.vector_store %arg6[%c0_12, %c0_13], %16 {strides = array<i32>} : memref<8x128xf32, #tpu.memory_space<vmem>>, vector<8x128xf32>,
    %cst_14 = arith.constant dense<0.000000e+00> : vector<128xf32>
    %18 = vector.multi_reduction <add>, %12, %cst_14 [0] : vector<64x128xf32> to vector<128xf32>
    %19 = vector.shape_cast %18 : vector<128xf32> to vector<1x128xf32>
    %20 = arith.mulf %12, %12 : vector<64x128xf32>
    %cst_15 = arith.constant dense<0.000000e+00> : vector<128xf32>
    %21 = vector.multi_reduction <add>, %20, %cst_15 [0] : vector<64x128xf32> to vector<128xf32>
    %22 = vector.shape_cast %21 : vector<128xf32> to vector<1x128xf32>
    %23 = tpu.concatenate %19, %22 in 0 : vector<1x128xf32>, vector<1x128xf32> -> vector<2x128xf32>
    %24 = vector.shape_cast %23 : vector<2x128xf32> to vector<1x2x128xf32>
    %c0_16 = arith.constant 0 : index
    %c0_17 = arith.constant 0 : index
    %c0_18 = arith.constant 0 : index
    %25 = vector.load %arg7[%c0_16, %c0_17, %c0_18] : memref<1x2x128xf32, #tpu.memory_space<vmem>>, vector<1x2x128xf32>
    tpu.vector_store %arg7[%c0_16, %c0_17, %c0_18], %24 {strides = array<i32>} : memref<1x2x128xf32, #tpu.memory_space<vmem>>, vector<1x2x128xf32>,
    return
  }
  func.func @transform_0(%arg0: i32) -> (i32, i32) {
    %c0_i32 = arith.constant 0 : i32
    %c0_i32_0 = arith.constant 0 : i32
    return %arg0, %c0_i32 : i32, i32
  }
  func.func @transform_1(%arg0: i32) -> (i32, i32) {
    %c0_i32 = arith.constant 0 : i32
    %c0_i32_0 = arith.constant 0 : i32
    %c0_i32_1 = arith.constant 0 : i32
    return %c0_i32, %c0_i32_0 : i32, i32
  }
  func.func @transform_2(%arg0: i32) -> (i32, i32) {
    %c0_i32 = arith.constant 0 : i32
    %c0_i32_0 = arith.constant 0 : i32
    %c0_i32_1 = arith.constant 0 : i32
    return %c0_i32, %c0_i32_0 : i32, i32
  }
  func.func @transform_3(%arg0: i32) -> (i32, i32) {
    %c0_i32 = arith.constant 0 : i32
    %c0_i32_0 = arith.constant 0 : i32
    %c0_i32_1 = arith.constant 0 : i32
    return %c0_i32, %c0_i32_0 : i32, i32
  }
  func.func @transform_4(%arg0: i32) -> (i32, i32) {
    %c0_i32 = arith.constant 0 : i32
    %c0_i32_0 = arith.constant 0 : i32
    return %arg0, %c0_i32 : i32, i32
  }
  func.func @transform_5(%arg0: i32) -> (i32, i32) {
    %c0_i32 = arith.constant 0 : i32
    %c0_i32_0 = arith.constant 0 : i32
    return %arg0, %c0_i32 : i32, i32
  }
  func.func @transform_6(%arg0: i32) -> (i32, i32, i32) {
    %c0_i32 = arith.constant 0 : i32
    %c0_i32_0 = arith.constant 0 : i32
    %c0_i32_1 = arith.constant 0 : i32
    return %arg0, %c0_i32, %c0_i32_0 : i32, i32, i32
  }
}

</mosaic_0001>

<llo_original>
// kernel: sa_mlp_max_pallas.2
$region0: #{sa_mlp_max_pallas.2}
  #allocation0 [shape = 'u32[]', space=smem, size = 0x4, offset = 0x4, fixed_abs, tag = 'smem constant byte address 0x4 - core index']
  #allocation1 [shape = 'u32[144,128]{1,0:T(1,128)}', space=vmem, size = 0x12000, scoped, tag = 'internal scratch']
  %s0 = inlined_call_operand.vmem [shape: bf16[64,8], index: 0, kind: input, shape index: {}]
  %s1 = inlined_call_operand.vmem [shape: bf16[8,128], index: 1, kind: input, shape index: {}]
  %s2 = inlined_call_operand.vmem [shape: bf16[64,128], index: 2, kind: output, shape index: {0}]
  %s3 = inlined_call_operand.vmem [shape: f32[1,2,128], index: 3, kind: output, shape index: {1}]
  %4 = xla_tuple %s2, %s3
  %s5 = sld [smem:[#allocation0]]
  $region26: #{sa_mlp_max_pallas.2} parent=0
    _
  %s7 = ssub.s32 1, %s5
  %s8 = scalar_select 0, %s7, %s5
  // Predicated region
  $region2: #{sa_mlp_max_pallas.2} parent=0 // pred_check
    _
  $region3: #{sa_mlp_max_pallas.2} parent=0 // pred_check_branch
    %10 = sbr.rel (0) target = $region5
  $region4: #{sa_mlp_max_pallas.2} parent=0 // pred_region
    _
  $region5: #{sa_mlp_max_pallas.2} parent=0 // pred_fallthru
    _
  // Predicated region
  $region6: #{sa_mlp_max_pallas.2} parent=0 // pred_check
    _
  $region7: #{sa_mlp_max_pallas.2} parent=0 // pred_check_branch
    %12 = sbr.rel (0) target = $region9
  $region8: #{sa_mlp_max_pallas.2} parent=0 // pred_region
    _
  $region9: #{sa_mlp_max_pallas.2} parent=0 // pred_fallthru
    _
  %v14 = vld [vmem:[%s0] sm:$0xf]
  %v15 = vld [vmem:[%s0 + $0x4] sm:$0xf]
  %v16 = vld [vmem:[%s0 + $0x8] sm:$0xf]
  %v17 = vld [vmem:[%s0 + $0xc] sm:$0xf]
  %v18 = vld [vmem:[%s0 + $0x10] sm:$0xf]
  %v19 = vld [vmem:[%s0 + $0x14] sm:$0xf]
  %v20 = vld [vmem:[%s0 + $0x18] sm:$0xf]
  %v21 = vld [vmem:[%s0 + $0x1c] sm:$0xf]
  %v22 = vld [vmem:[%s1] sm:$0xf]
  %v31 = vunpack.c.l.b16 %v14
  %v32 = vunpack.c.l.b16 %v15
  %v33 = vunpack.c.l.b16 %v16
  %v34 = vunpack.c.l.b16 %v17
  %v35 = vunpack.c.l.b16 %v18
  %v36 = vunpack.c.l.b16 %v19
  %v37 = vunpack.c.l.b16 %v20
  %v38 = vunpack.c.l.b16 %v21
  %v39 = vpack.c.b16 %v32, %v31
  %v40 = vpack.c.b16 %v34, %v33
  %v41 = vpack.c.b16 %v36, %v35
  %v42 = vpack.c.b16 %v38, %v37
  %vm43 = vcmask 64512
  %v45 = vsel %vm43, %v39, 0
  %v48 = vsel %vm43, %v40, 0
  %v51 = vsel %vm43, %v41, 0
  %v54 = vsel %vm43, %v42, 0
  %vm56 = vcmask 1043456
  %v58 = vsel %vm56, %v22, 0
  %60 = vmatprep.subr.bf16.mxu0 0
  %61 = vmatpush1.bf16.msra.mxu0 %v58
  %62 = vmatprep.subr.bf16.mxu0 0
  %63 = vmatpush1.bf16.msra.mxu0 0
  %64 = vmatprep.subr.bf16.mxu0 0
  %65 = vmatpush1.bf16.msra.mxu0 0
  %66 = vmatprep.subr.bf16.mxu0 0
  %67 = vmatpush1.bf16.msra.mxu0 0
  %68 = vmatprep.subr.bf16.mxu0 0
  %69 = vmatpush1.bf16.msra.mxu0 0
  %70 = vmatprep.subr.bf16.mxu0 0
  %71 = vmatpush1.bf16.msra.mxu0 0
  %72 = vmatprep.subr.bf16.mxu0 0
  %73 = vmatpush1.bf16.msra.mxu0 0
  %74 = vmatprep.subr.bf16.mxu0 0
  %75 = vmatpush1.bf16.msra.mxu0 0
  %76 = vmatprep.subr.bf16.mxu0 0
  %77 = vmatpush1.bf16.msra.mxu0 0
  %78 = vmatprep.subr.bf16.mxu0 0
  %79 = vmatpush1.bf16.msra.mxu0 0
  %80 = vmatprep.subr.bf16.mxu0 0
  %81 = vmatpush1.bf16.msra.mxu0 0
  %82 = vmatprep.subr.bf16.mxu0 0
  %83 = vmatpush1.bf16.msra.mxu0 0
  %84 = vmatprep.subr.bf16.mxu0 0
  %85 = vmatpush1.bf16.msra.mxu0 0
  %86 = vmatprep.subr.bf16.mxu0 0
  %87 = vmatpush1.bf16.msra.mxu0 0
  %88 = vmatprep.subr.bf16.mxu0 0
  %89 = vmatpush1.bf16.msra.mxu0 0
  %90 = vmatprep.subr.bf16.mxu0 0
  %91 = vmatpush1.bf16.msra.mxu0 0
  %92 = vmatprep.mubr.bf16.mxu0 0
  %93 = vmatmul.mubr.bf16.gmra.mrb[0].mxu0 %v45
  %v94 = vpop.f32.mrb[0].mxu0
  %v95 = vadd.f32 0.0, %v94
  %v96 = vpop.f32.mrb[0].mxu0
  %v97 = vpop.f32.mrb[0].mxu0
  %v98 = vadd.f32 0.0, %v97
  %v99 = vpop.f32.mrb[0].mxu0
  %100 = vmatprep.mubr.bf16.mxu0 0
  %101 = vmatmul.mubr.bf16.gmra.mrb[0].mxu0 %v48
  %v102 = vpop.f32.mrb[0].mxu0
  %v103 = vadd.f32 0.0, %v102
  %v104 = vpop.f32.mrb[0].mxu0
  %v105 = vpop.f32.mrb[0].mxu0
  %v106 = vadd.f32 0.0, %v105
  %v107 = vpop.f32.mrb[0].mxu0
  %108 = vmatprep.mubr.bf16.mxu0 0
  %109 = vmatmul.mubr.bf16.gmra.mrb[0].mxu0 %v51
  %v110 = vpop.f32.mrb[0].mxu0
  %v111 = vadd.f32 0.0, %v110
  %v112 = vpop.f32.mrb[0].mxu0
  %v113 = vpop.f32.mrb[0].mxu0
  %v114 = vadd.f32 0.0, %v113
  %v115 = vpop.f32.mrb[0].mxu0
  %116 = vmatprep.mubr.bf16.mxu0 0
  %117 = vmatmul.mubr.bf16.gmra.mrb[0].mxu0 %v54
  %v118 = vpop.f32.mrb[0].mxu0
  %v119 = vadd.f32 0.0, %v118
  %v120 = vpop.f32.mrb[0].mxu0
  %v121 = vpop.f32.mrb[0].mxu0
  %v122 = vadd.f32 0.0, %v121
  %v123 = vpop.f32.mrb[0].mxu0
  %124 = vdwg.mxu0
  %v125 = vpack.c.bf16 %v98, %v95
  %v126 = vpack.c.bf16 %v106, %v103
  %v127 = vpack.c.bf16 %v114, %v111
  %v128 = vpack.c.bf16 %v122, %v119
  %v133 = vunpack.c.l.b16 %v125
  %v134 = vunpack.c.h.b16 %v125
  %v135 = vunpack.c.l.b16 %v126
  %v136 = vunpack.c.h.b16 %v126
  %v137 = vunpack.c.l.b16 %v127
  %v138 = vunpack.c.h.b16 %v127
  %v139 = vunpack.c.l.b16 %v128
  %v140 = vunpack.c.h.b16 %v128
  %v141 = vpack.c.b16 %v133, %v133
  %v142 = vpack.c.b16 %v134, %v134
  %v143 = vpack.c.b16 %v135, %v135
  %v144 = vpack.c.b16 %v136, %v136
  %v145 = vpack.c.b16 %v137, %v137
  %v146 = vpack.c.b16 %v138, %v138
  %v147 = vpack.c.b16 %v139, %v139
  %v148 = vpack.c.b16 %v140, %v140
  %157 = vst [vmem:[%s2] sm:$0xf] %v141
  %158 = vst [vmem:[%s2 + $0x4] sm:$0xf] %v142
  %159 = vst [vmem:[%s2 + $0x8] sm:$0xf] %v143
  %160 = vst [vmem:[%s2 + $0xc] sm:$0xf] %v144
  %161 = vst [vmem:[%s2 + $0x10] sm:$0xf] %v145
  %162 = vst [vmem:[%s2 + $0x14] sm:$0xf] %v146
  %163 = vst [vmem:[%s2 + $0x18] sm:$0xf] %v147
  %164 = vst [vmem:[%s2 + $0x1c] sm:$0xf] %v148
  %v165 = vadd.f32 %v95, %v98
  %v166 = vadd.f32 %v165, %v103
  %v167 = vadd.f32 %v166, %v106
  %v168 = vadd.f32 %v167, %v111
  %v169 = vadd.f32 %v168, %v114
  %v170 = vadd.f32 %v169, %v119
  %v171 = vadd.f32 %v170, %v122
  %v172 = vrot.slane %v171, 4
  %v173 = vadd.f32 %v171, %v172
  %v174 = vrot.slane %v173, 2
  %v175 = vadd.f32 %v173, %v174
  %v176 = vrot.slane %v175, 1
  %v177 = vadd.f32 %v175, %v176
  %v178 = vmul.f32 %v95, %v95
  %v179 = vmul.f32 %v98, %v98
  %v180 = vmul.f32 %v103, %v103
  %v181 = vmul.f32 %v106, %v106
  %v182 = vmul.f32 %v111, %v111
  %v183 = vmul.f32 %v114, %v114
  %v184 = vmul.f32 %v119, %v119
  %v185 = vmul.f32 %v122, %v122
  %v186 = vadd.f32 %v178, %v179
  %v187 = vadd.f32 %v186, %v180
  %v188 = vadd.f32 %v187, %v181
  %v189 = vadd.f32 %v188, %v182
  %v190 = vadd.f32 %v189, %v183
  %v191 = vadd.f32 %v190, %v184
  %v192 = vadd.f32 %v191, %v185
  %v193 = vrot.slane %v192, 4
  %v194 = vadd.f32 %v192, %v193
  %v195 = vrot.slane %v194, 2
  %v196 = vadd.f32 %v194, %v195
  %v197 = vrot.slane %v196, 1
  %v198 = vadd.f32 %v196, %v197
  %vm199 = vcmask 1040384
  %v200 = vsel %vm199, %v177, %v198
  %201 = vst [vmem:[%s3] sm:$0x3] %v200
  // Predicated region
  $region10: #{sa_mlp_max_pallas.2} parent=0 // pred_check
    _
  $region11: #{sa_mlp_max_pallas.2} parent=0 // pred_check_branch
    %203 = sbr.rel (0) target = $region13
  $region12: #{sa_mlp_max_pallas.2} parent=0 // pred_region
    _
  $region13: #{sa_mlp_max_pallas.2} parent=0 // pred_fallthru
    _
  // Predicated region
  $region14: #{sa_mlp_max_pallas.2} parent=0 // pred_check
    _
  $region15: #{sa_mlp_max_pallas.2} parent=0 // pred_check_branch
    %205 = sbr.rel (0) target = $region17
  $region16: #{sa_mlp_max_pallas.2} parent=0 // pred_region
    _
  $region17: #{sa_mlp_max_pallas.2} parent=0 // pred_fallthru
    _
  // Predicated region
  $region18: #{sa_mlp_max_pallas.2} parent=0 // pred_check
    _
  $region19: #{sa_mlp_max_pallas.2} parent=0 // pred_check_branch
    %207 = sbr.rel (0) target = $region21
  $region20: #{sa_mlp_max_pallas.2} parent=0 // pred_region
    _
  $region21: #{sa_mlp_max_pallas.2} parent=0 // pred_fallthru
    _
  // Predicated region
  $region22: #{sa_mlp_max_pallas.2} parent=0 // pred_check
    _
  $region23: #{sa_mlp_max_pallas.2} parent=0 // pred_check_branch
    %209 = sbr.rel (0) target = $region25
  $region24: #{sa_mlp_max_pallas.2} parent=0 // pred_region
    _
  $region25: #{sa_mlp_max_pallas.2} parent=0 // pred_fallthru
    _

// kernel: sa_mlp_max_pallas.3
$region0: #{sa_mlp_max_pallas.3}
  #allocation0 [shape = 'u32[]', space=smem, size = 0x4, offset = 0x4, fixed_abs, tag = 'smem constant byte address 0x4 - core index']
  #allocation1 [shape = 'u32[144,128]{1,0:T(1,128)}', space=vmem, size = 0x12000, scoped, tag = 'internal scratch']
  %s0 = inlined_call_operand.vmem [shape: bf16[64,128], index: 0, kind: input, shape index: {}]
  %s1 = inlined_call_operand.vmem [shape: f32[1,128], index: 1, kind: input, shape index: {}]
  %s2 = inlined_call_operand.vmem [shape: f32[1,128], index: 2, kind: input, shape index: {}]
  %s3 = inlined_call_operand.vmem [shape: bf16[128,128], index: 3, kind: input, shape index: {}]
  %s4 = inlined_call_operand.vmem [shape: f32[8,128], index: 4, kind: output, shape index: {0}]
  %s5 = inlined_call_operand.vmem [shape: f32[8,128], index: 5, kind: output, shape index: {1}]
  %s6 = inlined_call_operand.vmem [shape: f32[1,2,128], index: 6, kind: output, shape index: {2}]
  %7 = xla_tuple %s4, %s5, %s6
  %s8 = sld [smem:[#allocation0]]
  $region42: #{sa_mlp_max_pallas.3} parent=0
    _
  %s10 = ssub.s32 1, %s8
  %s11 = scalar_select 0, %s10, %s8
  // Predicated region
  $region2: #{sa_mlp_max_pallas.3} parent=0 // pred_check
    _
  $region3: #{sa_mlp_max_pallas.3} parent=0 // pred_check_branch
    %13 = sbr.rel (0) target = $region5
  $region4: #{sa_mlp_max_pallas.3} parent=0 // pred_region
    _
  $region5: #{sa_mlp_max_pallas.3} parent=0 // pred_fallthru
    _
  // Predicated region
  $region6: #{sa_mlp_max_pallas.3} parent=0 // pred_check
    _
  $region7: #{sa_mlp_max_pallas.3} parent=0 // pred_check_branch
    %15 = sbr.rel (0) target = $region9
  $region8: #{sa_mlp_max_pallas.3} parent=0 // pred_region
    _
  $region9: #{sa_mlp_max_pallas.3} parent=0 // pred_fallthru
    _
  // Predicated region
  $region10: #{sa_mlp_max_pallas.3} parent=0 // pred_check
    _
  $region11: #{sa_mlp_max_pallas.3} parent=0 // pred_check_branch
    %17 = sbr.rel (0) target = $region13
  $region12: #{sa_mlp_max_pallas.3} parent=0 // pred_region
    _
  $region13: #{sa_mlp_max_pallas.3} parent=0 // pred_fallthru
    _
  // Predicated region
  $region14: #{sa_mlp_max_pallas.3} parent=0 // pred_check
    _
  $region15: #{sa_mlp_max_pallas.3} parent=0 // pred_check_branch
    %19 = sbr.rel (0) target = $region17
  $region16: #{sa_mlp_max_pallas.3} parent=0 // pred_region
    _
  $region17: #{sa_mlp_max_pallas.3} parent=0 // pred_fallthru
    _
  %v21 = vld [vmem:[%s0] sm:$0xf]
  %v22 = vld [vmem:[%s0 + $0x4] sm:$0xf]
  %v23 = vld [vmem:[%s0 + $0x8] sm:$0xf]
  %v24 = vld [vmem:[%s0 + $0xc] sm:$0xf]
  %v25 = vld [vmem:[%s0 + $0x10] sm:$0xf]
  %v26 = vld [vmem:[%s0 + $0x14] sm:$0xf]
  %v27 = vld [vmem:[%s0 + $0x18] sm:$0xf]
  %v28 = vld [vmem:[%s0 + $0x1c] sm:$0xf]
  %v29 = vunpack.c.l.bf16 %v21
  %v30 = vunpack.c.l.bf16 %v22
  %v31 = vunpack.c.l.bf16 %v23
  %v32 = vunpack.c.l.bf16 %v24
  %v33 = vunpack.c.l.bf16 %v25
  %v34 = vunpack.c.l.bf16 %v26
  %v35 = vunpack.c.l.bf16 %v27
  %v36 = vunpack.c.l.bf16 %v28
  %v37 = vld [vmem:[%s1] sm:$0x1]
  %v39 = vlaneseq
  %v40 = vshrl.u32 %v39, 7
  %v41 = vsub.s32 0, %v40
  %v42 = vrot.slane %v37, %v41
  %v44 = vmul.f32 %v29, %v42
  %v45 = vmul.f32 %v30, %v42
  %v46 = vmul.f32 %v31, %v42
  %v47 = vmul.f32 %v32, %v42
  %v48 = vmul.f32 %v33, %v42
  %v49 = vmul.f32 %v34, %v42
  %v50 = vmul.f32 %v35, %v42
  %v51 = vmul.f32 %v36, %v42
  %v52 = vld [vmem:[%s2] sm:$0x1]
  %v54 = vlaneseq
  %v55 = vshrl.u32 %v54, 7
  %v56 = vsub.s32 0, %v55
  %v57 = vrot.slane %v52, %v56
  %v59 = vadd.f32 %v44, %v57
  %v60 = vadd.f32 %v45, %v57
  %v61 = vadd.f32 %v46, %v57
  %v62 = vadd.f32 %v47, %v57
  %v63 = vadd.f32 %v48, %v57
  %v64 = vadd.f32 %v49, %v57
  %v65 = vadd.f32 %v50, %v57
  %v66 = vadd.f32 %v51, %v57
  %v67 = vmax.f32 %v59, 0.0
  %v68 = vmax.f32 %v60, 0.0
  %v69 = vmax.f32 %v61, 0.0
  %v70 = vmax.f32 %v62, 0.0
  %v71 = vmax.f32 %v63, 0.0
  %v72 = vmax.f32 %v64, 0.0
  %v73 = vmax.f32 %v65, 0.0
  %v74 = vmax.f32 %v66, 0.0
  %v75 = vpack.c.bf16 %v68, %v67
  %v76 = vpack.c.bf16 %v70, %v69
  %v77 = vpack.c.bf16 %v72, %v71
  %v78 = vpack.c.bf16 %v74, %v73
  %v79 = vld [vmem:[%s3] sm:$0xf]
  %v80 = vld [vmem:[%s3 + $0x4] sm:$0xf]
  %v81 = vld [vmem:[%s3 + $0x8] sm:$0xf]
  %v82 = vld [vmem:[%s3 + $0xc] sm:$0xf]
  %v83 = vld [vmem:[%s3 + $0x10] sm:$0xf]
  %v84 = vld [vmem:[%s3 + $0x14] sm:$0xf]
  %v85 = vld [vmem:[%s3 + $0x18] sm:$0xf]
  %v86 = vld [vmem:[%s3 + $0x1c] sm:$0xf]
  %v87 = vld [vmem:[%s3 + $0x20] sm:$0xf]
  %v88 = vld [vmem:[%s3 + $0x24] sm:$0xf]
  %v89 = vld [vmem:[%s3 + $0x28] sm:$0xf]
  %v90 = vld [vmem:[%s3 + $0x2c] sm:$0xf]
  %v91 = vld [vmem:[%s3 + $0x30] sm:$0xf]
  %v92 = vld [vmem:[%s3 + $0x34] sm:$0xf]
  %v93 = vld [vmem:[%s3 + $0x38] sm:$0xf]
  %v94 = vld [vmem:[%s3 + $0x3c] sm:$0xf]
  %v111 = vunpack.c.l.b16 %v79
  %v112 = vunpack.c.l.b16 %v80
  %v113 = vunpack.c.l.b16 %v81
  %v114 = vunpack.c.l.b16 %v82
  %v115 = vunpack.c.l.b16 %v83
  %v116 = vunpack.c.l.b16 %v84
  %v117 = vunpack.c.l.b16 %v85
  %v118 = vunpack.c.l.b16 %v86
  %v119 = vunpack.c.l.b16 %v87
  %v120 = vunpack.c.l.b16 %v88
  %v121 = vunpack.c.l.b16 %v89
  %v122 = vunpack.c.l.b16 %v90
  %v123 = vunpack.c.l.b16 %v91
  %v124 = vunpack.c.l.b16 %v92
  %v125 = vunpack.c.l.b16 %v93
  %v126 = vunpack.c.l.b16 %v94
  %v127 = vpack.c.b16 %v112, %v111
  %v128 = vpack.c.b16 %v114, %v113
  %v129 = vpack.c.b16 %v116, %v115
  %v130 = vpack.c.b16 %v118, %v117
  %v131 = vpack.c.b16 %v120, %v119
  %v132 = vpack.c.b16 %v122, %v121
  %v133 = vpack.c.b16 %v124, %v123
  %v134 = vpack.c.b16 %v126, %v125
  %143 = vmatprep.subr.bf16.mxu0 0
  %144 = vmatpush1.bf16.msra.mxu0 %v127
  %145 = vmatprep.subr.bf16.mxu0 0
  %146 = vmatpush1.bf16.msra.mxu0 %v128
  %147 = vmatprep.subr.bf16.mxu0 0
  %148 = vmatpush1.bf16.msra.mxu0 %v129
  %149 = vmatprep.subr.bf16.mxu0 0
  %150 = vmatpush1.bf16.msra.mxu0 %v130
  %151 = vmatprep.subr.bf16.mxu0 0
  %152 = vmatpush1.bf16.msra.mxu0 %v131
  %153 = vmatprep.subr.bf16.mxu0 0
  %154 = vmatpush1.bf16.msra.mxu0 %v132
  %155 = vmatprep.subr.bf16.mxu0 0
  %156 = vmatpush1.bf16.msra.mxu0 %v133
  %157 = vmatprep.subr.bf16.mxu0 0
  %158 = vmatpush1.bf16.msra.mxu0 %v134
  %159 = vmatprep.subr.bf16.mxu0 0
  %160 = vmatpush1.bf16.msra.mxu0 0
  %161 = vmatprep.subr.bf16.mxu0 0
  %162 = vmatpush1.bf16.msra.mxu0 0
  %163 = vmatprep.subr.bf16.mxu0 0
  %164 = vmatpush1.bf16.msra.mxu0 0
  %165 = vmatprep.subr.bf16.mxu0 0
  %166 = vmatpush1.bf16.msra.mxu0 0
  %167 = vmatprep.subr.bf16.mxu0 0
  %168 = vmatpush1.bf16.msra.mxu0 0
  %169 = vmatprep.subr.bf16.mxu0 0
  %170 = vmatpush1.bf16.msra.mxu0 0
  %171 = vmatprep.subr.bf16.mxu0 0
  %172 = vmatpush1.bf16.msra.mxu0 0
  %173 = vmatprep.subr.bf16.mxu0 0
  %174 = vmatpush1.bf16.msra.mxu0 0
  %175 = vmatprep.mubr.bf16.mxu0 0
  %176 = vmatmul.mubr.bf16.gmra.mrb[0].mxu0 %v75
  %v177 = vpop.f32.mrb[0].mxu0
  %v178 = vadd.f32 0.0, %v177
  %v179 = vpop.f32.mrb[0].mxu0
  %v180 = vpop.f32.mrb[0].mxu0
  %v181 = vadd.f32 0.0, %v180
  %v182 = vpop.f32.mrb[0].mxu0
  %183 = vmatprep.mubr.bf16.mxu0 0
  %184 = vmatmul.mubr.bf16.gmra.mrb[0].mxu0 %v76
  %v185 = vpop.f32.mrb[0].mxu0
  %v186 = vadd.f32 0.0, %v185
  %v187 = vpop.f32.mrb[0].mxu0
  %v188 = vpop.f32.mrb[0].mxu0
  %v189 = vadd.f32 0.0, %v188
  %v190 = vpop.f32.mrb[0].mxu0
  %191 = vmatprep.mubr.bf16.mxu0 0
  %192 = vmatmul.mubr.bf16.gmra.mrb[0].mxu0 %v77
  %v193 = vpop.f32.mrb[0].mxu0
  %v194 = vadd.f32 0.0, %v193
  %v195 = vpop.f32.mrb[0].mxu0
  %v196 = vpop.f32.mrb[0].mxu0
  %v197 = vadd.f32 0.0, %v196
  %v198 = vpop.f32.mrb[0].mxu0
  %199 = vmatprep.mubr.bf16.mxu0 0
  %200 = vmatmul.mubr.bf16.gmra.mrb[0].mxu0 %v78
  %v201 = vpop.f32.mrb[0].mxu0
  %v202 = vadd.f32 0.0, %v201
  %v203 = vpop.f32.mrb[0].mxu0
  %v204 = vpop.f32.mrb[0].mxu0
  %v205 = vadd.f32 0.0, %v204
  %v206 = vpop.f32.mrb[0].mxu0
  %207 = vdwg.mxu0
  %v208 = vrot.slane %v178, 4
  %v209 = vmax.f32 %v178, %v208
  %v210 = vrot.slane %v209, 2
  %v211 = vmax.f32 %v209, %v210
  %v212 = vrot.slane %v211, 1
  %v213 = vmax.f32 %v211, %v212
  %v214 = vrot.slane %v181, 4
  %v215 = vmax.f32 %v181, %v214
  %v216 = vrot.slane %v215, 2
  %v217 = vmax.f32 %v215, %v216
  %v218 = vrot.slane %v217, 1
  %v219 = vmax.f32 %v217, %v218
  %v220 = vrot.slane %v186, 4
  %v221 = vmax.f32 %v186, %v220
  %v222 = vrot.slane %v221, 2
  %v223 = vmax.f32 %v221, %v222
  %v224 = vrot.slane %v223, 1
  %v225 = vmax.f32 %v223, %v224
  %v226 = vrot.slane %v189, 4
  %v227 = vmax.f32 %v189, %v226
  %v228 = vrot.slane %v227, 2
  %v229 = vmax.f32 %v227, %v228
  %v230 = vrot.slane %v229, 1
  %v231 = vmax.f32 %v229, %v230
  %v232 = vrot.slane %v194, 4
  %v233 = vmax.f32 %v194, %v232
  %v234 = vrot.slane %v233, 2
  %v235 = vmax.f32 %v233, %v234
  %v236 = vrot.slane %v235, 1
  %v237 = vmax.f32 %v235, %v236
  %v238 = vrot.slane %v197, 4
  %v239 = vmax.f32 %v197, %v238
  %v240 = vrot.slane %v239, 2
  %v241 = vmax.f32 %v239, %v240
  %v242 = vrot.slane %v241, 1
  %v243 = vmax.f32 %v241, %v242
  %v244 = vrot.slane %v202, 4
  %v245 = vmax.f32 %v202, %v244
  %v246 = vrot.slane %v245, 2
  %v247 = vmax.f32 %v245, %v246
  %v248 = vrot.slane %v247, 1
  %v249 = vmax.f32 %v247, %v248
  %v250 = vrot.slane %v205, 4
  %v251 = vmax.f32 %v205, %v250
  %v252 = vrot.slane %v251, 2
  %v253 = vmax.f32 %v251, %v252
  %v254 = vrot.slane %v253, 1
  %v255 = vmax.f32 %v253, %v254
  %vm264 = vcmask 1041409
  %v265 = vsel %vm264, %v219, %v213
  %vm266 = vcmask 1042434
  %v267 = vsel %vm266, %v225, %v265
  %vm268 = vcmask 1043459
  %v269 = vsel %vm268, %v231, %v267
  %vm270 = vcmask 1044484
  %v271 = vsel %vm270, %v237, %v269
  %vm272 = vcmask 1045509
  %v273 = vsel %vm272, %v243, %v271
  %vm274 = vcmask 1046534
  %v275 = vsel %vm274, %v249, %v273
  %vm276 = vcmask 1047559
  %v277 = vsel %vm276, %v255, %v275
  %279 = vst [vmem:[%s4] sm:$0xff] %v277
  %v280 = vrot.slane %v178, 4
  %v281 = vmin.f32 %v178, %v280
  %v282 = vrot.slane %v281, 2
  %v283 = vmin.f32 %v281, %v282
  %v284 = vrot.slane %v283, 1
  %v285 = vmin.f32 %v283, %v284
  %v286 = vrot.slane %v181, 4
  %v287 = vmin.f32 %v181, %v286
  %v288 = vrot.slane %v287, 2
  %v289 = vmin.f32 %v287, %v288
  %v290 = vrot.slane %v289, 1
  %v291 = vmin.f32 %v289, %v290
  %v292 = vrot.slane %v186, 4
  %v293 = vmin.f32 %v186, %v292
  %v294 = vrot.slane %v293, 2
  %v295 = vmin.f32 %v293, %v294
  %v296 = vrot.slane %v295, 1
  %v297 = vmin.f32 %v295, %v296
  %v298 = vrot.slane %v189, 4
  %v299 = vmin.f32 %v189, %v298
  %v300 = vrot.slane %v299, 2
  %v301 = vmin.f32 %v299, %v300
  %v302 = vrot.slane %v301, 1
  %v303 = vmin.f32 %v301, %v302
  %v304 = vrot.slane %v194, 4
  %v305 = vmin.f32 %v194, %v304
  %v306 = vrot.slane %v305, 2
  %v307 = vmin.f32 %v305, %v306
  %v308 = vrot.slane %v307, 1
  %v309 = vmin.f32 %v307, %v308
  %v310 = vrot.slane %v197, 4
  %v311 = vmin.f32 %v197, %v310
  %v312 = vrot.slane %v311, 2
  %v313 = vmin.f32 %v311, %v312
  %v314 = vrot.slane %v313, 1
  %v315 = vmin.f32 %v313, %v314
  %v316 = vrot.slane %v202, 4
  %v317 = vmin.f32 %v202, %v316
  %v318 = vrot.slane %v317, 2
  %v319 = vmin.f32 %v317, %v318
  %v320 = vrot.slane %v319, 1
  %v321 = vmin.f32 %v319, %v320
  %v322 = vrot.slane %v205, 4
  %v323 = vmin.f32 %v205, %v322
  %v324 = vrot.slane %v323, 2
  %v325 = vmin.f32 %v323, %v324
  %v326 = vrot.slane %v325, 1
  %v327 = vmin.f32 %v325, %v326
  %v336 = vsel %vm264, %v291, %v285
  %v337 = vsel %vm266, %v297, %v336
  %v338 = vsel %vm268, %v303, %v337
  %v339 = vsel %vm270, %v309, %v338
  %v340 = vsel %vm272, %v315, %v339
  %v341 = vsel %vm274, %v321, %v340
  %v342 = vsel %vm276, %v327, %v341
  %344 = vst [vmem:[%s5] sm:$0xff] %v342
  %v345 = vadd.f32 %v178, %v181
  %v346 = vadd.f32 %v345, %v186
  %v347 = vadd.f32 %v346, %v189
  %v348 = vadd.f32 %v347, %v194
  %v349 = vadd.f32 %v348, %v197
  %v350 = vadd.f32 %v349, %v202
  %v351 = vadd.f32 %v350, %v205
  %v352 = vrot.slane %v351, 4
  %v353 = vadd.f32 %v351, %v352
  %v354 = vrot.slane %v353, 2
  %v355 = vadd.f32 %v353, %v354
  %v356 = vrot.slane %v355, 1
  %v357 = vadd.f32 %v355, %v356
  %v358 = vmul.f32 %v178, %v178
  %v359 = vmul.f32 %v181, %v181
  %v360 = vmul.f32 %v186, %v186
  %v361 = vmul.f32 %v189, %v189
  %v362 = vmul.f32 %v194, %v194
  %v363 = vmul.f32 %v197, %v197
  %v364 = vmul.f32 %v202, %v202
  %v365 = vmul.f32 %v205, %v205
  %v366 = vadd.f32 %v358, %v359
  %v367 = vadd.f32 %v366, %v360
  %v368 = vadd.f32 %v367, %v361
  %v369 = vadd.f32 %v368, %v362
  %v370 = vadd.f32 %v369, %v363
  %v371 = vadd.f32 %v370, %v364
  %v372 = vadd.f32 %v371, %v365
  %v373 = vrot.slane %v372, 4
  %v374 = vadd.f32 %v372, %v373
  %v375 = vrot.slane %v374, 2
  %v376 = vadd.f32 %v374, %v375
  %v377 = vrot.slane %v376, 1
  %v378 = vadd.f32 %v376, %v377
  %vm379 = vcmask 1040384
  %v380 = vsel %vm379, %v357, %v378
  %381 = vst [vmem:[%s6] sm:$0x3] %v380
  // Predicated region
  $region18: #{sa_mlp_max_pallas.3} parent=0 // pred_check
    _
  $region19: #{sa_mlp_max_pallas.3} parent=0 // pred_check_branch
    %383 = sbr.rel (0) target = $region21
  $region20: #{sa_mlp_max_pallas.3} parent=0 // pred_region
    _
  $region21: #{sa_mlp_max_pallas.3} parent=0 // pred_fallthru
    _
  // Predicated region
  $region22: #{sa_mlp_max_pallas.3} parent=0 // pred_check
    _
  $region23: #{sa_mlp_max_pallas.3} parent=0 // pred_check_branch
    %385 = sbr.rel (0) target = $region25
  $region24: #{sa_mlp_max_pallas.3} parent=0 // pred_region
    _
  $region25: #{sa_mlp_max_pallas.3} parent=0 // pred_fallthru
    _
  // Predicated region
  $region26: #{sa_mlp_max_pallas.3} parent=0 // pred_check
    _
  $region27: #{sa_mlp_max_pallas.3} parent=0 // pred_check_branch
    %387 = sbr.rel (0) target = $region29
  $region28: #{sa_mlp_max_pallas.3} parent=0 // pred_region
    _
  $region29: #{sa_mlp_max_pallas.3} parent=0 // pred_fallthru
    _
  // Predicated region
  $region30: #{sa_mlp_max_pallas.3} parent=0 // pred_check
    _
  $region31: #{sa_mlp_max_pallas.3} parent=0 // pred_check_branch
    %389 = sbr.rel (0) target = $region33
  $region32: #{sa_mlp_max_pallas.3} parent=0 // pred_region
    _
  $region33: #{sa_mlp_max_pallas.3} parent=0 // pred_fallthru
    _
  // Predicated region
  $region34: #{sa_mlp_max_pallas.3} parent=0 // pred_check
    _
  $region35: #{sa_mlp_max_pallas.3} parent=0 // pred_check_branch
    %391 = sbr.rel (0) target = $region37
  $region36: #{sa_mlp_max_pallas.3} parent=0 // pred_region
    _
  $region37: #{sa_mlp_max_pallas.3} parent=0 // pred_fallthru
    _
  // Predicated region
  $region38: #{sa_mlp_max_pallas.3} parent=0 // pred_check
    _
  $region39: #{sa_mlp_max_pallas.3} parent=0 // pred_check_branch
    %393 = sbr.rel (0) target = $region41
  $region40: #{sa_mlp_max_pallas.3} parent=0 // pred_region
    _
  $region41: #{sa_mlp_max_pallas.3} parent=0 // pred_fallthru
    _

</llo_original>
